<compile_context>
chip_gen: v6e
topology: v6e:2x2x1
jax: 0.10.0
libtpu: 0.0.40
codegen_flags: <defaults>
</compile_context>

<pallas_src>
import functools
import math

import jax
import jax.numpy as jnp
from jax.experimental import pallas as pl
from jax.experimental.pallas import tpu as pltpu


# ---------------------------------------------------------------------------
# Kernel: one (row_tile, k_tile) step of  out = act(A_hat @ feat + b)
# ---------------------------------------------------------------------------
def _gcn_agg_kernel(a_ref, feat_ref, b_ref, o_ref, acc_ref, *, activation,
                    valid_cols):
    """Streamed aggregation.  feat already carries W (and the int8 dequant scale)."""
    k = pl.program_id(1)

    @pl.when(k == 0)
    def _():
        acc_ref[...] = jnp.zeros_like(acc_ref)

    # int8 -> bf16 is exact for |q| <= 127; dequant scale is folded into feat.
    a_bf = a_ref[...].astype(jnp.bfloat16)
    acc_ref[...] += jnp.dot(a_bf, feat_ref[...],
                            preferred_element_type=jnp.float32)

    @pl.when(k == pl.num_programs(1) - 1)
    def _():
        o = acc_ref[...] + b_ref[...]                       # bias in f32
        if activation == "relu":
            o = jnp.maximum(o, 0.0)
        else:  # log_softmax over the real (unpadded) output channels
            lane = jax.lax.broadcasted_iota(jnp.int32, o.shape, 1)
            valid = lane < valid_cols
            om = jnp.where(valid, o, -jnp.inf)
            m = jnp.max(om, axis=1, keepdims=True)
            z = om - m
            lse = jnp.log(jnp.sum(jnp.exp(z), axis=1, keepdims=True))
            o = jnp.where(valid, z - lse, 0.0)              # pad lanes -> 0, not -inf
        o_ref[...] = o.astype(o_ref.dtype)


# ---------------------------------------------------------------------------
# Helpers
# ---------------------------------------------------------------------------
def _round_up(v, m):
    return -(-v // m) * m


def _pad2(arr, rows, cols):
    return jnp.pad(arr, ((0, rows - arr.shape[0]), (0, cols - arr.shape[1])))


def _quantize_a(a):
    """int8 quantization of A_hat with a single global scale (A_hat in [0,1])."""
    scale = jnp.maximum(jnp.max(jnp.abs(a)), 1e-30) / 127.0
    a_q = jnp.clip(jnp.round(a / scale), -127.0, 127.0).astype(jnp.int8)
    return a_q, scale


def _vmem_limit_bytes():
    """Generation-aware scoped-VMEM limit: ~3/4 of physical, 32 MiB fallback."""
    try:
        info = pltpu.get_tpu_info()
        phys = getattr(info, "vmem_capacity_bytes", None)
        if phys:
            return int(phys) * 3 // 4          # 96 MiB on v5e/v6e, 48 MiB on v7x
    except Exception:
        pass
    return 32 * 1024 * 1024


# ---------------------------------------------------------------------------
# Wrapper
# ---------------------------------------------------------------------------
@functools.partial(jax.jit, static_argnames=("row_tile", "k_tile"))
def graph_cnn_forward(a_hat, x, w1, b1, w2, b2, *, row_tile=None, k_tile=None):
    """Full GraphCNN forward (two GCN layers). Returns (N, out_c) float32."""
    n, _ = x.shape
    hid_c = w1.shape[1]
    out_c = w2.shape[1]

    LANE = 128
    hid_p = _round_up(hid_c, LANE)
    out_p = _round_up(out_c, LANE)

    # --- tiling (all Python ints; shapes are static under jit) ---
    if row_tile is None:
        n_pad = _round_up(n, LANE)
        row_tile = next(c for c in (512, 256, 128) if n_pad % c == 0)
        if n_pad == row_tile:
            row_tile //= 2                     # >=2 row tiles: balance v7x's 2 TCs
    else:
        assert row_tile % 32 == 0, "row_tile must be a multiple of 32"
        n_pad = _round_up(n, math.lcm(LANE, row_tile))
    assert n_pad % row_tile == 0 and n_pad % LANE == 0

    if k_tile is None:
        k_tile = LANE
        for cand in range(min(2048, n_pad), LANE - 1, -LANE):
            if n_pad % cand == 0:
                k_tile = cand
                break
    assert k_tile % LANE == 0 and n_pad % k_tile == 0

    bf = jnp.bfloat16
    cparams = pltpu.CompilerParams(
        dimension_semantics=("parallel", "arbitrary"),
        vmem_limit_bytes=_vmem_limit_bytes(),
    )
    grid = (n_pad // row_tile, n_pad // k_tile)

    def layer(a_q, feat, bias, out_dtype, activation, width, valid_cols):
        flops = 2 * n_pad * n_pad * width
        bytes_accessed = (
            n_pad * n_pad                       # int8 A stream
            + grid[0] * n_pad * width * 2       # bf16 feat, re-streamed per row tile
            + n_pad * width * jnp.dtype(out_dtype).itemsize)
        transcendentals = n_pad * width if activation == "log_softmax" else 0
        return pl.pallas_call(
            functools.partial(_gcn_agg_kernel, activation=activation,
                              valid_cols=valid_cols),
            out_shape=jax.ShapeDtypeStruct((n_pad, width), out_dtype),
            grid=grid,
            in_specs=[
                pl.BlockSpec((row_tile, k_tile), lambda i, k: (i, k)),  # A stream
                pl.BlockSpec((k_tile, width), lambda i, k: (k, 0)),     # feat slab
                pl.BlockSpec((1, width), lambda i, k: (0, 0)),          # bias
            ],
            out_specs=pl.BlockSpec((row_tile, width), lambda i, k: (i, 0)),
            scratch_shapes=[pltpu.VMEM((row_tile, width), jnp.float32)],
            compiler_params=cparams,
            cost_estimate=pl.CostEstimate(flops=flops,
                                          transcendentals=transcendentals,
                                          bytes_accessed=bytes_accessed),
        )(a_q, feat, bias)

    # --- int8 A stream (dequant scale folded into the narrow feat operands) ---
    a_q, scale = _quantize_a(_pad2(a_hat, n_pad, n_pad))

    # --- Layer 1: H = relu(A_hat @ (X @ W1) + b1) ---
    xw1 = jnp.dot(x.astype(bf), w1.astype(bf), preferred_element_type=jnp.float32)
    feat1 = _pad2(xw1 * scale, n_pad, hid_p).astype(bf)
    b1_p = _pad2(b1, 1, hid_p).astype(jnp.float32)
    h = layer(a_q, feat1, b1_p, bf, "relu", hid_p, hid_c)        # (n_pad, hid_p) bf16

    # --- Layer 2: out = log_softmax(A_hat @ (H @ W2) + b2) ---
    w2_p = _pad2(w2, hid_p, out_p).astype(bf)
    hw2 = jnp.dot(h, w2_p, preferred_element_type=jnp.float32)
    feat2 = (hw2 * scale).astype(bf)
    b2_p = _pad2(b2, 1, out_p).astype(jnp.float32)
    out = layer(a_q, feat2, b2_p, jnp.float32, "log_softmax", out_p, out_c)

    return out[:n, :out_c]


# ---------------------------------------------------------------------------
# Graph glue (matches PyG GCNConv propagation: A_hat = D^-1/2 (A + I) D^-1/2)
# ---------------------------------------------------------------------------
def build_normalized_adjacency(edge_index, num_nodes):
    src, dst = edge_index
    adj = jnp.zeros((num_nodes, num_nodes), jnp.float32)
    adj = adj.at[dst, src].set(1.0)               # message src -> dst (dedups dupes)
    idx = jnp.arange(num_nodes)
    adj = adj.at[idx, idx].set(1.0)               # self-loop weight exactly 1
    deg = jnp.sum(adj, axis=1)
    d_inv_sqrt = jnp.where(deg > 0, jax.lax.rsqrt(deg), 0.0)
    return d_inv_sqrt[:, None] * adj * d_inv_sqrt[None, :]


def glorot(key, shape):
    fan_in, fan_out = shape
    limit = jnp.sqrt(6.0 / (fan_in + fan_out))
    return jax.random.uniform(key, shape, jnp.float32, -limit, limit)


if __name__ == "__main__":
    # Small synthetic graph: 16 nodes, bidirectional ring edges.
    N, IN_C, HID_C, OUT_C = 16, 8, 32, 8

    key = jax.random.PRNGKey(0)
    k_x, k_w1, k_w2 = jax.random.split(key, 3)

    x = jax.random.normal(k_x, (N, IN_C), jnp.float32)

    fwd = jnp.stack([jnp.arange(N), (jnp.arange(N) + 1) % N])
    bwd = jnp.stack([(jnp.arange(N) + 1) % N, jnp.arange(N)])
    edge_index = jnp.concatenate([fwd, bwd], axis=1)

    a_hat = build_normalized_adjacency(edge_index, N)

    w1 = glorot(k_w1, (IN_C, HID_C))
    b1 = jnp.zeros((1, HID_C), jnp.float32)
    w2 = glorot(k_w2, (HID_C, OUT_C))
    b2 = jnp.zeros((1, OUT_C), jnp.float32)

    # row_tile=64 with n_pad=128 exercises a real 2-step row grid at toy size.
    out = graph_cnn_forward(a_hat, x, w1, b1, w2, b2, row_tile=64)
    out = jax.block_until_ready(out)

    # Tight check: mirror the kernel's numerics exactly (int8-quantized A with
    # the scale folded into the narrow feature operand, bf16 MXU inputs, f32
    # accumulation, hoisted X@W1 / H@W2 transforms).
    a_q_ref, scale_ref = _quantize_a(a_hat)
    bf = jnp.bfloat16
    a_qb = a_q_ref.astype(bf)
    f1 = (jnp.dot(x.astype(bf), w1.astype(bf),
                  preferred_element_type=jnp.float32) * scale_ref).astype(bf)
    h_ref = jnp.maximum(
        jnp.dot(a_qb, f1, preferred_element_type=jnp.float32) + b1, 0.0)
    f2 = (jnp.dot(h_ref.astype(bf), w2.astype(bf),
                  preferred_element_type=jnp.float32) * scale_ref).astype(bf)
    logits = jnp.dot(a_qb, f2, preferred_element_type=jnp.float32) + b2
    ref_tight = jax.nn.log_softmax(logits, axis=1)
    assert jnp.allclose(out, ref_tight, atol=3e-3), "mismatch vs matched reference"

    # Loose check vs the full-f32 reference (bf16 + int8-A error budget only).
    h32 = jnp.maximum(a_hat @ (x @ w1) + b1, 0.0)
    ref32 = jax.nn.log_softmax(a_hat @ (h32 @ w2) + b2, axis=1)
    assert jnp.allclose(out, ref32, atol=1e-1), "mismatch vs f32 reference"

    print("KERNEL_OK")
</pallas_src>

<mosaic_0001>
module attributes {stable_mosaic.version = 11 : i64} {
  func.func @_gcn_agg_kernel(%arg0: i32, %arg1: i32, %arg2: memref<64x128xi8, #tpu.memory_space<vmem>>, %arg3: memref<128x128xbf16, #tpu.memory_space<vmem>>, %arg4: memref<1x128xf32, #tpu.memory_space<vmem>>, %arg5: memref<64x128xbf16, #tpu.memory_space<vmem>>, %arg6: memref<64x128xf32, #tpu.memory_space<vmem>>) attributes {dimension_semantics = [#tpu.dimension_semantics<parallel>, #tpu.dimension_semantics<arbitrary>], iteration_bounds = array<i64: 2, 1>, scalar_prefetch = 0 : i64, scratch_operands = 1 : i64, tpu.core_type = #tpu.core_type<tc>, window_params = [{transform_indices = @transform_0, window_bounds = array<i64: 64, 128>}, {transform_indices = @transform_1, window_bounds = array<i64: 128, 128>}, {pipeline_mode = #tpu.pipeline_mode<synchronous>, transform_indices = @transform_2, window_bounds = array<i64: 1, 128>}, {transform_indices = @transform_3, window_bounds = array<i64: 64, 128>}]} {
    %c0_i32 = arith.constant 0 : i32
    %0 = arith.cmpi eq, %arg1, %c0_i32 : i32
    %1 = arith.extui %0 : i1 to i32
    %c0_i32_0 = arith.constant 0 : i32
    %2 = arith.cmpi ne, %1, %c0_i32_0 : i32
    scf.if %2 {
      %cst_10 = arith.constant 0.000000e+00 : f32
      %13 = vector.broadcast %cst_10 : f32 to vector<64x128xf32>
      %c0_11 = arith.constant 0 : index
      %c0_12 = arith.constant 0 : index
      %14 = vector.load %arg6[%c0_11, %c0_12] : memref<64x128xf32, #tpu.memory_space<vmem>>, vector<64x128xf32>
      tpu.vector_store %arg6[%c0_11, %c0_12], %13 {strides = array<i32>} : memref<64x128xf32, #tpu.memory_space<vmem>>, vector<64x128xf32>,
    } else {
    }
    %c0 = arith.constant 0 : index
    %c0_1 = arith.constant 0 : index
    %3 = vector.load %arg2[%c0, %c0_1] : memref<64x128xi8, #tpu.memory_space<vmem>>, vector<64x128xi8>
    %4 = arith.sitofp %3 : vector<64x128xi8> to vector<64x128xbf16>
    %c0_2 = arith.constant 0 : index
    %c0_3 = arith.constant 0 : index
    %5 = vector.load %arg6[%c0_2, %c0_3] : memref<64x128xf32, #tpu.memory_space<vmem>>, vector<64x128xf32>
    %c0_4 = arith.constant 0 : index
    %c0_5 = arith.constant 0 : index
    %6 = vector.load %arg3[%c0_4, %c0_5] : memref<128x128xbf16, #tpu.memory_space<vmem>>, vector<128x128xbf16>
    %cst = arith.constant dense<0.000000e+00> : vector<64x128xf32>
    %7 = tpu.matmul %4, %6, %cst {dimension_numbers = #tpu.dot_dimension_numbers<[1], [0], [0], [1], [0, 0, 1, 1], [], []>} : vector<64x128xbf16>, vector<128x128xbf16>, vector<64x128xf32> -> vector<64x128xf32>
    %8 = arith.addf %5, %7 : vector<64x128xf32>
    %c0_6 = arith.constant 0 : index
    %c0_7 = arith.constant 0 : index
    %9 = vector.load %arg6[%c0_6, %c0_7] : memref<64x128xf32, #tpu.memory_space<vmem>>, vector<64x128xf32>
    tpu.vector_store %arg6[%c0_6, %c0_7], %8 {strides = array<i32>} : memref<64x128xf32, #tpu.memory_space<vmem>>, vector<64x128xf32>,
    %c0_i32_8 = arith.constant 0 : i32
    %10 = arith.cmpi eq, %arg1, %c0_i32_8 : i32
    %11 = arith.extui %10 : i1 to i32
    %c0_i32_9 = arith.constant 0 : i32
    %12 = arith.cmpi ne, %11, %c0_i32_9 : i32
    scf.if %12 {
      %c0_10 = arith.constant 0 : index
      %c0_11 = arith.constant 0 : index
      %13 = vector.load %arg6[%c0_10, %c0_11] : memref<64x128xf32, #tpu.memory_space<vmem>>, vector<64x128xf32>
      %c0_12 = arith.constant 0 : index
      %c0_13 = arith.constant 0 : index
      %14 = vector.load %arg4[%c0_12, %c0_13] : memref<1x128xf32, #tpu.memory_space<vmem>>, vector<1x128xf32>
      %15 = vector.broadcast %14 : vector<1x128xf32> to vector<64x128xf32>
      %16 = arith.addf %13, %15 : vector<64x128xf32>
      %cst_14 = arith.constant 0.000000e+00 : f32
      %17 = vector.broadcast %cst_14 : f32 to vector<64x128xf32>
      %18 = arith.maximumf %16, %17 : vector<64x128xf32>
      %19 = arith.truncf %18 : vector<64x128xf32> to vector<64x128xbf16>
      %c0_15 = arith.constant 0 : index
      %c0_16 = arith.constant 0 : index
      %20 = vector.load %arg5[%c0_15, %c0_16] : memref<64x128xbf16, #tpu.memory_space<vmem>>, vector<64x128xbf16>
      tpu.vector_store %arg5[%c0_15, %c0_16], %19 {strides = array<i32>} : memref<64x128xbf16, #tpu.memory_space<vmem>>, vector<64x128xbf16>,
    } else {
    }
    return
  }
  func.func @transform_0(%arg0: i32, %arg1: i32) -> (i32, i32) {
    %c0_i32 = arith.constant 0 : i32
    return %arg0, %arg1 : i32, i32
  }
  func.func @transform_1(%arg0: i32, %arg1: i32) -> (i32, i32) {
    %c0_i32 = arith.constant 0 : i32
    %c0_i32_0 = arith.constant 0 : i32
    return %arg1, %c0_i32 : i32, i32
  }
  func.func @transform_2(%arg0: i32, %arg1: i32) -> (i32, i32) {
    %c0_i32 = arith.constant 0 : i32
    %c0_i32_0 = arith.constant 0 : i32
    %c0_i32_1 = arith.constant 0 : i32
    return %c0_i32, %c0_i32_0 : i32, i32
  }
  func.func @transform_3(%arg0: i32, %arg1: i32) -> (i32, i32) {
    %c0_i32 = arith.constant 0 : i32
    %c0_i32_0 = arith.constant 0 : i32
    return %arg0, %c0_i32 : i32, i32
  }
}

module attributes {stable_mosaic.version = 11 : i64} {
  func.func @_gcn_agg_kernel(%arg0: i32, %arg1: i32, %arg2: memref<64x128xi8, #tpu.memory_space<vmem>>, %arg3: memref<128x128xbf16, #tpu.memory_space<vmem>>, %arg4: memref<1x128xf32, #tpu.memory_space<vmem>>, %arg5: memref<64x128xf32, #tpu.memory_space<vmem>>, %arg6: memref<64x128xf32, #tpu.memory_space<vmem>>) attributes {dimension_semantics = [#tpu.dimension_semantics<parallel>, #tpu.dimension_semantics<arbitrary>], iteration_bounds = array<i64: 2, 1>, scalar_prefetch = 0 : i64, scratch_operands = 1 : i64, tpu.core_type = #tpu.core_type<tc>, window_params = [{transform_indices = @transform_0, window_bounds = array<i64: 64, 128>}, {transform_indices = @transform_1, window_bounds = array<i64: 128, 128>}, {pipeline_mode = #tpu.pipeline_mode<synchronous>, transform_indices = @transform_2, window_bounds = array<i64: 1, 128>}, {transform_indices = @transform_3, window_bounds = array<i64: 64, 128>}]} {
    %c0_i32 = arith.constant 0 : i32
    %0 = arith.cmpi eq, %arg1, %c0_i32 : i32
    %1 = arith.extui %0 : i1 to i32
    %c0_i32_0 = arith.constant 0 : i32
    %2 = arith.cmpi ne, %1, %c0_i32_0 : i32
    scf.if %2 {
      %cst_10 = arith.constant 0.000000e+00 : f32
      %13 = vector.broadcast %cst_10 : f32 to vector<64x128xf32>
      %c0_11 = arith.constant 0 : index
      %c0_12 = arith.constant 0 : index
      %14 = vector.load %arg6[%c0_11, %c0_12] : memref<64x128xf32, #tpu.memory_space<vmem>>, vector<64x128xf32>
      tpu.vector_store %arg6[%c0_11, %c0_12], %13 {strides = array<i32>} : memref<64x128xf32, #tpu.memory_space<vmem>>, vector<64x128xf32>,
    } else {
    }
    %c0 = arith.constant 0 : index
    %c0_1 = arith.constant 0 : index
    %3 = vector.load %arg2[%c0, %c0_1] : memref<64x128xi8, #tpu.memory_space<vmem>>, vector<64x128xi8>
    %4 = arith.sitofp %3 : vector<64x128xi8> to vector<64x128xbf16>
    %c0_2 = arith.constant 0 : index
    %c0_3 = arith.constant 0 : index
    %5 = vector.load %arg6[%c0_2, %c0_3] : memref<64x128xf32, #tpu.memory_space<vmem>>, vector<64x128xf32>
    %c0_4 = arith.constant 0 : index
    %c0_5 = arith.constant 0 : index
    %6 = vector.load %arg3[%c0_4, %c0_5] : memref<128x128xbf16, #tpu.memory_space<vmem>>, vector<128x128xbf16>
    %cst = arith.constant dense<0.000000e+00> : vector<64x128xf32>
    %7 = tpu.matmul %4, %6, %cst {dimension_numbers = #tpu.dot_dimension_numbers<[1], [0], [0], [1], [0, 0, 1, 1], [], []>} : vector<64x128xbf16>, vector<128x128xbf16>, vector<64x128xf32> -> vector<64x128xf32>
    %8 = arith.addf %5, %7 : vector<64x128xf32>
    %c0_6 = arith.constant 0 : index
    %c0_7 = arith.constant 0 : index
    %9 = vector.load %arg6[%c0_6, %c0_7] : memref<64x128xf32, #tpu.memory_space<vmem>>, vector<64x128xf32>
    tpu.vector_store %arg6[%c0_6, %c0_7], %8 {strides = array<i32>} : memref<64x128xf32, #tpu.memory_space<vmem>>, vector<64x128xf32>,
    %c0_i32_8 = arith.constant 0 : i32
    %10 = arith.cmpi eq, %arg1, %c0_i32_8 : i32
    %11 = arith.extui %10 : i1 to i32
    %c0_i32_9 = arith.constant 0 : i32
    %12 = arith.cmpi ne, %11, %c0_i32_9 : i32
    scf.if %12 {
      %c0_10 = arith.constant 0 : index
      %c0_11 = arith.constant 0 : index
      %13 = vector.load %arg6[%c0_10, %c0_11] : memref<64x128xf32, #tpu.memory_space<vmem>>, vector<64x128xf32>
      %c0_12 = arith.constant 0 : index
      %c0_13 = arith.constant 0 : index
      %14 = vector.load %arg4[%c0_12, %c0_13] : memref<1x128xf32, #tpu.memory_space<vmem>>, vector<1x128xf32>
      %15 = vector.broadcast %14 : vector<1x128xf32> to vector<64x128xf32>
      %16 = arith.addf %13, %15 : vector<64x128xf32>
      %17 = tpu.iota {dimensions = array<i32: 1>} : vector<64x128xi32>
      %c8_i32 = arith.constant 8 : i32
      %18 = vector.broadcast %c8_i32 : i32 to vector<64x128xi32>
      %19 = arith.cmpi slt, %17, %18 : vector<64x128xi32>
      %cst_14 = arith.constant 0xFF800000 : f32
      %20 = vector.broadcast %cst_14 : f32 to vector<64x128xf32>
      %21 = arith.select %19, %16, %20 : vector<64x128xi1>, vector<64x128xf32>
      %cst_15 = arith.constant dense<0xFF800000> : vector<64xf32>
      %22 = vector.multi_reduction <maximumf>, %21, %cst_15 [1] : vector<64x128xf32> to vector<64xf32>
      %23 = vector.shape_cast %22 : vector<64xf32> to vector<64x1xf32>
      %24 = vector.broadcast %23 : vector<64x1xf32> to vector<64x128xf32>
      %25 = arith.subf %21, %24 : vector<64x128xf32>
      %26 = math.exp %25 : vector<64x128xf32>
      %cst_16 = arith.constant dense<0.000000e+00> : vector<64xf32>
      %27 = vector.multi_reduction <add>, %26, %cst_16 [1] : vector<64x128xf32> to vector<64xf32>
      %28 = vector.shape_cast %27 : vector<64xf32> to vector<64x1xf32>
      %29 = math.log %28 : vector<64x1xf32>
      %30 = vector.broadcast %29 : vector<64x1xf32> to vector<64x128xf32>
      %31 = arith.subf %25, %30 : vector<64x128xf32>
      %cst_17 = arith.constant 0.000000e+00 : f32
      %32 = vector.broadcast %cst_17 : f32 to vector<64x128xf32>
      %33 = arith.select %19, %31, %32 : vector<64x128xi1>, vector<64x128xf32>
      %c0_18 = arith.constant 0 : index
      %c0_19 = arith.constant 0 : index
      %34 = vector.load %arg5[%c0_18, %c0_19] : memref<64x128xf32, #tpu.memory_space<vmem>>, vector<64x128xf32>
      tpu.vector_store %arg5[%c0_18, %c0_19], %33 {strides = array<i32>} : memref<64x128xf32, #tpu.memory_space<vmem>>, vector<64x128xf32>,
    } else {
    }
    return
  }
  func.func @transform_0(%arg0: i32, %arg1: i32) -> (i32, i32) {
    %c0_i32 = arith.constant 0 : i32
    return %arg0, %arg1 : i32, i32
  }
  func.func @transform_1(%arg0: i32, %arg1: i32) -> (i32, i32) {
    %c0_i32 = arith.constant 0 : i32
    %c0_i32_0 = arith.constant 0 : i32
    return %arg1, %c0_i32 : i32, i32
  }
  func.func @transform_2(%arg0: i32, %arg1: i32) -> (i32, i32) {
    %c0_i32 = arith.constant 0 : i32
    %c0_i32_0 = arith.constant 0 : i32
    %c0_i32_1 = arith.constant 0 : i32
    return %c0_i32, %c0_i32_0 : i32, i32
  }
  func.func @transform_3(%arg0: i32, %arg1: i32) -> (i32, i32) {
    %c0_i32 = arith.constant 0 : i32
    %c0_i32_0 = arith.constant 0 : i32
    return %arg0, %c0_i32 : i32, i32
  }
}

</mosaic_0001>

<llo_original>
// kernel: graph_cnn_forward.2
$region0: #{graph_cnn_forward.2}
  #allocation0 [shape = 'u32[]', space=smem, size = 0x4, offset = 0x4, fixed_abs, tag = 'smem constant byte address 0x4 - core index']
  #allocation1 [shape = 'u32[144,128]{1,0:T(1,128)}', space=vmem, size = 0x12000, scoped, tag = 'internal scratch']
  #allocation2 [shape = 'f32[64,128]{1,0:T(8,128)}', space=vmem, size = 0x8000, scoped, tag = 'scratch operand']
  %s0 = inlined_call_operand.vmem [shape: s8[128,128], index: 0, kind: input, shape index: {}]
  %s1 = inlined_call_operand.vmem [shape: bf16[128,128], index: 1, kind: input, shape index: {}]
  %s2 = inlined_call_operand.vmem [shape: f32[1,128], index: 2, kind: input, shape index: {}]
  %s3 = inlined_call_operand.vmem [shape: bf16[128,128], index: 3, kind: output, shape index: {}]
  %s4 = sld [smem:[#allocation0]]
  $region53: #{graph_cnn_forward.2} parent=0
    _
  %s6 = ssub.s32 1, %s4
  %s7 = scalar_select 0, %s6, %s4
  loop: start=0, step=1, limit=4
  $region2: #{graph_cnn_forward.2} parent=0 // loop_pre_header
    _
  $region3: #{graph_cnn_forward.2} parent=0 // loop_header
    %s9 = sphi 0, %s13
    %p10 = scmp.ge.s32.totalorder %s9, 4
    %s16 = sphi 0, %s28
    %s17 = sphi 0, %s24
    %s18 = sphi 0, %s16
    %s19 = sphi 0, %s17
    %s20 = sphi 0, %s18
    %s21 = sphi 0, %s19
    %s33 = sphi 0, %s35
    %s36 = sphi 0, %s33
    %s37 = sphi 0, %s36
    %s53 = sphi 0, %s37
    %s59 = sphi 0, %s61
    %s62 = sphi 0, %s59
    %s63 = sphi 0, %s62
    %s79 = sphi 0, %s63
    %s83 = sphi 0, %s83
    %s85 = sphi 0, %s83
    %s86 = sphi 0, %s85
    %s100 = sphi 0, %s86
    %s106 = sphi 0, %s108
    %s109 = sphi 0, %s106
    %s110 = sphi 0, %s109
    %s126 = sphi 0, %s110
  $region4: #{graph_cnn_forward.2} parent=0 // loop_header_branch
    %12 = sbr.rel (%p10) target = $region8
  $region5: #{graph_cnn_forward.2} parent=0 // loop_body
    %s14 = ssub.s32 %s9, 1
    %s15 = ssub.s32 %s9, 2
    %s22 = sadd.s32 1, %s17
    %p23 = scmp.ge.s32.totalorder %s22, 1
    %s24 = scalar_select %p23, 0, %s22
    %s25 = sadd.s32 1, %s16
    %s26 = scalar_select %p23, %s25, %s16
    %p27 = scmp.ge.s32.totalorder %s26, 2
    %s28 = scalar_select %p27, 0, %s26
    %s29 = ssub.s32 %s16, %s28
    %s30 = ssub.s32 %s17, %s24
    %s31 = sor.u32 %s29, %s30
    %p32 = scmp.eq.s32.totalorder %s31, 0
    %s34 = sadd.s32 %s33, 1
    %s35 = scalar_select %p32, %s33, %s34
    %p38 = pneg %p32
    %p39 = scmp.eq.s32.totalorder %s9, 1
    %p40 = por %p38, %p39
    %p41 = scmp.ne.s32.totalorder %s33, %s36
    %p42 = scmp.eq.s32.totalorder %s9, 0
    %p43 = por %p41, %p42
    %p44 = scmp.ne.s32.totalorder %s33, %s36
    %p45 = scmp.eq.s32.totalorder %s14, 1
    %p46 = por %p44, %p45
    %p47 = scmp.ne.s32.totalorder %s36, %s37
    %p48 = scmp.eq.s32.totalorder %s14, 0
    %p49 = por %p47, %p48
    %p50 = scmp.ne.s32.totalorder %s36, %s37
    %p51 = scmp.eq.s32.totalorder %s15, 1
    %p52 = por %p50, %p51
    %p54 = scmp.ne.s32.totalorder %s37, %s53
    %p55 = scmp.eq.s32.totalorder %s15, 0
    %p56 = por %p54, %p55
    %s57 = ssub.s32 %s17, %s24
    %p58 = scmp.eq.s32.totalorder %s57, 0
    %s60 = sadd.s32 %s59, 1
    %s61 = scalar_select %p58, %s59, %s60
    %p64 = pneg %p58
    %p65 = scmp.eq.s32.totalorder %s9, 1
    %p66 = por %p64, %p65
    %p67 = scmp.ne.s32.totalorder %s59, %s62
    %p68 = scmp.eq.s32.totalorder %s9, 0
    %p69 = por %p67, %p68
    %p70 = scmp.ne.s32.totalorder %s59, %s62
    %p71 = scmp.eq.s32.totalorder %s14, 1
    %p72 = por %p70, %p71
    %p73 = scmp.ne.s32.totalorder %s62, %s63
    %p74 = scmp.eq.s32.totalorder %s14, 0
    %p75 = por %p73, %p74
    %p76 = scmp.ne.s32.totalorder %s62, %s63
    %p77 = scmp.eq.s32.totalorder %s15, 1
    %p78 = por %p76, %p77
    %p80 = scmp.ne.s32.totalorder %s63, %s79
    %p81 = scmp.eq.s32.totalorder %s15, 0
    %p82 = por %p80, %p81
    %s84 = sadd.s32 %s83, 1
    %p87 = scmp.eq.s32.totalorder %s9, 1
    %p88 = scmp.ne.s32.totalorder %s83, %s85
    %p89 = scmp.eq.s32.totalorder %s9, 0
    %p90 = por %p88, %p89
    %p91 = scmp.ne.s32.totalorder %s83, %s85
    %p92 = scmp.eq.s32.totalorder %s14, 1
    %p93 = por %p91, %p92
    %p94 = scmp.ne.s32.totalorder %s85, %s86
    %p95 = scmp.eq.s32.totalorder %s14, 0
    %p96 = por %p94, %p95
    %p97 = scmp.ne.s32.totalorder %s85, %s86
    %p98 = scmp.eq.s32.totalorder %s15, 1
    %p99 = por %p97, %p98
    %p101 = scmp.ne.s32.totalorder %s86, %s100
    %p102 = scmp.eq.s32.totalorder %s15, 0
    %p103 = por %p101, %p102
    %s104 = ssub.s32 %s16, %s28
    %p105 = scmp.eq.s32.totalorder %s104, 0
    %s107 = sadd.s32 %s106, 1
    %s108 = scalar_select %p105, %s106, %s107
    %p111 = pneg %p105
    %p112 = scmp.eq.s32.totalorder %s9, 1
    %p113 = por %p111, %p112
    %p114 = scmp.ne.s32.totalorder %s106, %s109
    %p115 = scmp.eq.s32.totalorder %s9, 0
    %p116 = por %p114, %p115
    %p117 = scmp.ne.s32.totalorder %s106, %s109
    %p118 = scmp.eq.s32.totalorder %s14, 1
    %p119 = por %p117, %p118
    %p120 = scmp.ne.s32.totalorder %s109, %s110
    %p121 = scmp.eq.s32.totalorder %s14, 0
    %p122 = por %p120, %p121
    %p123 = scmp.ne.s32.totalorder %s109, %s110
    %p124 = scmp.eq.s32.totalorder %s15, 1
    %p125 = por %p123, %p124
    %p127 = scmp.ne.s32.totalorder %s110, %s126
    %p128 = scmp.eq.s32.totalorder %s15, 0
    %p129 = por %p127, %p128
    %p130 = scmp.le.s32.totalorder 1, %s9
    %p131 = scmp.lt.s32.totalorder %s9, 3
    %p132 = pnand %p130, %p131
    %p133 = pneg %p132
    // Predicated region
    $region9: #{graph_cnn_forward.2} parent=5 // pred_check
      _
    $region10: #{graph_cnn_forward.2} parent=5 // pred_check_branch
      %135 = sbr.rel (%p132) target = $region12
    $region11: #{graph_cnn_forward.2} parent=5 // pred_region
      %s136 = ssub.s32 %s9, 1
      // Predicated region
      $region13: #{graph_cnn_forward.2} parent=11 // pred_check
        %p137 = pneg %p75
      $region14: #{graph_cnn_forward.2} parent=11 // pred_check_branch
        %139 = sbr.rel (%p137) target = $region16
      $region15: #{graph_cnn_forward.2} parent=11 // pred_region
        %s140 = smul.u32 16, %s19
        %p141 = scmp.lt.s32.totalorder %s140, 15
        %s142 = scalar_select %p141, %s140, 15
        %s143 = smul.addr %s142, 4
        %s144 = scalar_lea.vmem %s1, %s143
        %s145 = smul.u32 16, %s19
      $region16: #{graph_cnn_forward.2} parent=11 // pred_fallthru
        _
      // Predicated region
      $region17: #{graph_cnn_forward.2} parent=11 // pred_check
        %p146 = pneg %p96
      $region18: #{graph_cnn_forward.2} parent=11 // pred_check_branch
        %148 = sbr.rel (%p146) target = $region20
      $region19: #{graph_cnn_forward.2} parent=11 // pred_region
        _
      $region20: #{graph_cnn_forward.2} parent=11 // pred_fallthru
        _
    $region12: #{graph_cnn_forward.2} parent=5 // pred_fallthru
      _
    %p149 = scmp.lt.s32.totalorder %s9, 2
    // Predicated region
    $region21: #{graph_cnn_forward.2} parent=5 // pred_check
      %p150 = pneg %p149
    $region22: #{graph_cnn_forward.2} parent=5 // pred_check_branch
      %152 = sbr.rel (%p150) target = $region24
    $region23: #{graph_cnn_forward.2} parent=5 // pred_region
      // Predicated region
      $region25: #{graph_cnn_forward.2} parent=23 // pred_check
        %p153 = pneg %p43
      $region26: #{graph_cnn_forward.2} parent=23 // pred_check_branch
        %155 = sbr.rel (%p153) target = $region28
      $region27: #{graph_cnn_forward.2} parent=23 // pred_region
        %s156 = smul.u32 2, %s16
        %p157 = scmp.lt.s32.totalorder %s156, 3
        %s158 = scalar_select %p157, %s156, 3
        %p159 = scmp.lt.s32.totalorder %s17, 0
        %s160 = scalar_select %p159, %s17, 0
        %s161 = sadd.s32 %s160, %s158
        %s162 = smul.addr %s161, 8
        %s163 = scalar_lea.vmem %s0, %s162
        %s164 = smul.u32 2, %s16
      $region28: #{graph_cnn_forward.2} parent=23 // pred_fallthru
        _
    $region24: #{graph_cnn_forward.2} parent=5 // pred_fallthru
      _
    %p165 = scmp.le.s32.totalorder 1, %s9
    %p166 = scmp.lt.s32.totalorder %s9, 3
    %p167 = pnand %p165, %p166
    %p168 = pneg %p167
    // Predicated region
    $region29: #{graph_cnn_forward.2} parent=5 // pred_check
      _
    $region30: #{graph_cnn_forward.2} parent=5 // pred_check_branch
      %170 = sbr.rel (%p167) target = $region32
    $region31: #{graph_cnn_forward.2} parent=5 // pred_region
      %s171 = ssub.s32 %s9, 1
      %s172 = smul.u32 2, %s18
      %p173 = scmp.lt.s32.totalorder %s172, 3
      %s174 = scalar_select %p173, %s172, 3
      %p175 = scmp.lt.s32.totalorder %s19, 0
      %s176 = scalar_select %p175, %s19, 0
      %s177 = sadd.s32 %s176, %s174
      %s178 = smul.addr %s177, 8
      %s179 = scalar_lea.vmem %s0, %s178
      %p180 = pneg %p49
      %p181 = pneg %p46
      %s182 = smul.u32 16, %s19
      %p183 = scmp.lt.s32.totalorder %s182, 15
      %s184 = scalar_select %p183, %s182, 15
      %s185 = smul.addr %s184, 4
      %s186 = scalar_lea.vmem %s1, %s185
      %p187 = pneg %p75
      %p188 = pneg %p72
      %p189 = pneg %p96
      %p190 = pneg %p93
      %p191 = pneg %p122
      %p192 = pneg %p119
      %s193 = smul.u32 8, %s18
      %p194 = scmp.lt.s32.totalorder %s193, 15
      %s195 = scalar_select %p194, %s193, 15
      %s196 = smul.addr %s195, 4
      %s197 = scalar_lea.vmem %s3, %s196
      %s198 = smul.u32 2, %s18
      %p199 = scmp.lt.s32.totalorder %s198, 3
      %s200 = scalar_select %p199, %s198, 3
      %p201 = scmp.lt.s32.totalorder %s19, 0
      %s202 = scalar_select %p201, %s19, 0
      %s203 = sadd.s32 %s202, %s200
      %s204 = smul.addr %s203, 8
      %s205 = scalar_lea.vmem %s0, %s204
      %s206 = smul.u32 2, %s18
      %s207 = smul.u32 16, %s19
      %p208 = scmp.lt.s32.totalorder %s207, 15
      %s209 = scalar_select %p208, %s207, 15
      %s210 = smul.addr %s209, 4
      %s211 = scalar_lea.vmem %s1, %s210
      %s212 = smul.u32 16, %s19
      %s213 = smul.u32 8, %s18
      %p214 = scmp.lt.s32.totalorder %s213, 15
      %s215 = scalar_select %p214, %s213, 15
      %s216 = smul.addr %s215, 4
      %s217 = scalar_lea.vmem %s3, %s216
      %s218 = smul.u32 8, %s18
      %p220 = scmp.eq.s32.totalorder %s19, 0
      // Predicated region
      $region33: #{graph_cnn_forward.2} parent=31 // pred_check
        %p221 = pneg %p220
      $region34: #{graph_cnn_forward.2} parent=31 // pred_check_branch
        %223 = sbr.rel (%p221) target = $region36
      $region35: #{graph_cnn_forward.2} parent=31 // pred_region
        %224 = vst [vmem:[#allocation2] sm:$0xff] 0.0
        %225 = vst [vmem:[#allocation2 + $0x8] sm:$0xff] 0.0
        %226 = vst [vmem:[#allocation2 + $0x10] sm:$0xff] 0.0
        %227 = vst [vmem:[#allocation2 + $0x18] sm:$0xff] 0.0
        %228 = vst [vmem:[#allocation2 + $0x20] sm:$0xff] 0.0
        %229 = vst [vmem:[#allocation2 + $0x28] sm:$0xff] 0.0
        %230 = vst [vmem:[#allocation2 + $0x30] sm:$0xff] 0.0
        %231 = vst [vmem:[#allocation2 + $0x38] sm:$0xff] 0.0
      $region36: #{graph_cnn_forward.2} parent=31 // pred_fallthru
        _
      %v232 = vld [vmem:[%s205] sm:$0xff]
      %v233 = vld [vmem:[%s205 + $0x8] sm:$0xff]
      %v234 = vunpack.c.l.s8.bf16 %v232
      %v235 = vunpack.c.h.s8.bf16 %v232
      %v236 = vunpack.c.l.s8.bf16 %v233
      %v237 = vunpack.c.h.s8.bf16 %v233
      %v238 = vld [vmem:[#allocation2] sm:$0xff]
      %v239 = vld [vmem:[#allocation2 + $0x8] sm:$0xff]
      %v240 = vld [vmem:[#allocation2 + $0x10] sm:$0xff]
      %v241 = vld [vmem:[#allocation2 + $0x18] sm:$0xff]
      %v242 = vld [vmem:[#allocation2 + $0x20] sm:$0xff]
      %v243 = vld [vmem:[#allocation2 + $0x28] sm:$0xff]
      %v244 = vld [vmem:[#allocation2 + $0x30] sm:$0xff]
      %v245 = vld [vmem:[#allocation2 + $0x38] sm:$0xff]
      %v246 = vld [vmem:[%s211] sm:$0xf]
      %v247 = vld [vmem:[%s211 + $0x4] sm:$0xf]
      %v248 = vld [vmem:[%s211 + $0x8] sm:$0xf]
      %v249 = vld [vmem:[%s211 + $0xc] sm:$0xf]
      %v250 = vld [vmem:[%s211 + $0x10] sm:$0xf]
      %v251 = vld [vmem:[%s211 + $0x14] sm:$0xf]
      %v252 = vld [vmem:[%s211 + $0x18] sm:$0xf]
      %v253 = vld [vmem:[%s211 + $0x1c] sm:$0xf]
      %v254 = vld [vmem:[%s211 + $0x20] sm:$0xf]
      %v255 = vld [vmem:[%s211 + $0x24] sm:$0xf]
      %v256 = vld [vmem:[%s211 + $0x28] sm:$0xf]
      %v257 = vld [vmem:[%s211 + $0x2c] sm:$0xf]
      %v258 = vld [vmem:[%s211 + $0x30] sm:$0xf]
      %v259 = vld [vmem:[%s211 + $0x34] sm:$0xf]
      %v260 = vld [vmem:[%s211 + $0x38] sm:$0xf]
      %v261 = vld [vmem:[%s211 + $0x3c] sm:$0xf]
      %v278 = vunpack.c.l.b16 %v246
      %v279 = vunpack.c.l.b16 %v247
      %v280 = vunpack.c.l.b16 %v248
      %v281 = vunpack.c.l.b16 %v249
      %v282 = vunpack.c.l.b16 %v250
      %v283 = vunpack.c.l.b16 %v251
      %v284 = vunpack.c.l.b16 %v252
      %v285 = vunpack.c.l.b16 %v253
      %v286 = vunpack.c.l.b16 %v254
      %v287 = vunpack.c.l.b16 %v255
      %v288 = vunpack.c.l.b16 %v256
      %v289 = vunpack.c.l.b16 %v257
      %v290 = vunpack.c.l.b16 %v258
      %v291 = vunpack.c.l.b16 %v259
      %v292 = vunpack.c.l.b16 %v260
      %v293 = vunpack.c.l.b16 %v261
      %v294 = vpack.c.b16 %v279, %v278
      %v295 = vpack.c.b16 %v281, %v280
      %v296 = vpack.c.b16 %v283, %v282
      %v297 = vpack.c.b16 %v285, %v284
      %v298 = vpack.c.b16 %v287, %v286
      %v299 = vpack.c.b16 %v289, %v288
      %v300 = vpack.c.b16 %v291, %v290
      %v301 = vpack.c.b16 %v293, %v292
      %310 = vmatprep.subr.bf16.mxu0 0
      %311 = vmatpush1.bf16.msra.mxu0 %v301
      %312 = vmatprep.subr.bf16.mxu0 0
      %313 = vmatpush1.bf16.msra.mxu0 %v300
      %314 = vmatprep.subr.bf16.mxu0 0
      %315 = vmatpush1.bf16.msra.mxu0 %v299
      %316 = vmatprep.subr.bf16.mxu0 0
      %317 = vmatpush1.bf16.msra.mxu0 %v298
      %318 = vmatprep.subr.bf16.mxu0 0
      %319 = vmatpush1.bf16.msra.mxu0 %v297
      %320 = vmatprep.subr.bf16.mxu0 0
      %321 = vmatpush1.bf16.msra.mxu0 %v296
      %322 = vmatprep.subr.bf16.mxu0 0
      %323 = vmatpush1.bf16.msra.mxu0 %v295
      %324 = vmatprep.subr.bf16.mxu0 0
      %325 = vmatpush1.bf16.msra.mxu0 %v294
      %326 = vmatprep.subr.bf16.mxu0 0
      %327 = vmatpush2.bf16.msra.mxu0 0
      %328 = vmatprep.subr.bf16.mxu0 0
      %329 = vmatpush2.bf16.msra.mxu0 0
      %330 = vmatprep.subr.bf16.mxu0 0
      %331 = vmatpush2.bf16.msra.mxu0 0
      %332 = vmatprep.subr.bf16.mxu0 0
      %333 = vmatpush2.bf16.msra.mxu0 0
      %334 = vmatprep.subr.bf16.mxu0 0
      %335 = vmatpush2.bf16.msra.mxu0 0
      %336 = vmatprep.subr.bf16.mxu0 0
      %337 = vmatpush2.bf16.msra.mxu0 0
      %338 = vmatprep.subr.bf16.mxu0 0
      %339 = vmatpush2.bf16.msra.mxu0 0
      %340 = vmatprep.subr.bf16.mxu0 0
      %341 = vmatpush2.bf16.msra.mxu0 0
      %342 = vmatprep.mubr.bf16.mxu0 0
      %343 = vmatmul.mubr.bf16.gmra.mxu0 %v234
      %v344 = vpop.f32.mrf.mxu0
      %v345 = vadd.f32 0.0, %v344
      %v346 = vpop.f32.mrf.mxu0
      %v347 = vpop.f32.mrf.mxu0
      %v348 = vadd.f32 0.0, %v347
      %v349 = vpop.f32.mrf.mxu0
      %350 = vmatprep.mubr.bf16.mxu0 0
      %351 = vmatmul.mubr.bf16.gmra.mxu0 %v235
      %v352 = vpop.f32.mrf.mxu0
      %v353 = vadd.f32 0.0, %v352
      %v354 = vpop.f32.mrf.mxu0
      %v355 = vpop.f32.mrf.mxu0
      %v356 = vadd.f32 0.0, %v355
      %v357 = vpop.f32.mrf.mxu0
      %358 = vmatprep.mubr.bf16.mxu0 0
      %359 = vmatmul.mubr.bf16.gmra.mxu0 %v236
      %v360 = vpop.f32.mrf.mxu0
      %v361 = vadd.f32 0.0, %v360
      %v362 = vpop.f32.mrf.mxu0
      %v363 = vpop.f32.mrf.mxu0
      %v364 = vadd.f32 0.0, %v363
      %v365 = vpop.f32.mrf.mxu0
      %366 = vmatprep.mubr.bf16.mxu0 0
      %367 = vmatmul.mubr.bf16.gmra.mxu0 %v237
      %v368 = vpop.f32.mrf.mxu0
      %v369 = vadd.f32 0.0, %v368
      %v370 = vpop.f32.mrf.mxu0
      %v371 = vpop.f32.mrf.mxu0
      %v372 = vadd.f32 0.0, %v371
      %v373 = vpop.f32.mrf.mxu0
      %374 = vdwg.mxu0
      %v375 = vadd.f32 %v238, %v345
      %v376 = vadd.f32 %v239, %v348
      %v377 = vadd.f32 %v240, %v353
      %v378 = vadd.f32 %v241, %v356
      %v379 = vadd.f32 %v242, %v361
      %v380 = vadd.f32 %v243, %v364
      %v381 = vadd.f32 %v244, %v369
      %v382 = vadd.f32 %v245, %v372
      %383 = vst [vmem:[#allocation2] sm:$0xff] %v375
      %384 = vst [vmem:[#allocation2 + $0x8] sm:$0xff] %v376
      %385 = vst [vmem:[#allocation2 + $0x10] sm:$0xff] %v377
      %386 = vst [vmem:[#allocation2 + $0x18] sm:$0xff] %v378
      %387 = vst [vmem:[#allocation2 + $0x20] sm:$0xff] %v379
      %388 = vst [vmem:[#allocation2 + $0x28] sm:$0xff] %v380
      %389 = vst [vmem:[#allocation2 + $0x30] sm:$0xff] %v381
      %390 = vst [vmem:[#allocation2 + $0x38] sm:$0xff] %v382
      // Predicated region
      $region37: #{graph_cnn_forward.2} parent=31 // pred_check
        %p391 = pneg %p220
      $region38: #{graph_cnn_forward.2} parent=31 // pred_check_branch
        %393 = sbr.rel (%p391) target = $region40
      $region39: #{graph_cnn_forward.2} parent=31 // pred_region
        %v394 = vld [vmem:[#allocation2] sm:$0xff]
        %v395 = vld [vmem:[#allocation2 + $0x8] sm:$0xff]
        %v396 = vld [vmem:[#allocation2 + $0x10] sm:$0xff]
        %v397 = vld [vmem:[#allocation2 + $0x18] sm:$0xff]
        %v398 = vld [vmem:[#allocation2 + $0x20] sm:$0xff]
        %v399 = vld [vmem:[#allocation2 + $0x28] sm:$0xff]
        %v400 = vld [vmem:[#allocation2 + $0x30] sm:$0xff]
        %v401 = vld [vmem:[#allocation2 + $0x38] sm:$0xff]
        %v402 = vld [vmem:[%s2] sm:$0x1]
        %v404 = vlaneseq
        %v405 = vshrl.u32 %v404, 7
        %v406 = vsub.s32 0, %v405
        %v407 = vrot.slane %v402, %v406
        %v409 = vadd.f32 %v394, %v407
        %v410 = vadd.f32 %v395, %v407
        %v411 = vadd.f32 %v396, %v407
        %v412 = vadd.f32 %v397, %v407
        %v413 = vadd.f32 %v398, %v407
        %v414 = vadd.f32 %v399, %v407
        %v415 = vadd.f32 %v400, %v407
        %v416 = vadd.f32 %v401, %v407
        %v417 = vmax.f32 %v409, 0.0
        %v418 = vmax.f32 %v410, 0.0
        %v419 = vmax.f32 %v411, 0.0
        %v420 = vmax.f32 %v412, 0.0
        %v421 = vmax.f32 %v413, 0.0
        %v422 = vmax.f32 %v414, 0.0
        %v423 = vmax.f32 %v415, 0.0
        %v424 = vmax.f32 %v416, 0.0
        %v425 = vpack.c.bf16 %v418, %v417
        %v426 = vpack.c.bf16 %v420, %v419
        %v427 = vpack.c.bf16 %v422, %v421
        %v428 = vpack.c.bf16 %v424, %v423
        %v433 = vunpack.c.l.b16 %v425
        %v434 = vunpack.c.h.b16 %v425
        %v435 = vunpack.c.l.b16 %v426
        %v436 = vunpack.c.h.b16 %v426
        %v437 = vunpack.c.l.b16 %v427
        %v438 = vunpack.c.h.b16 %v427
        %v439 = vunpack.c.l.b16 %v428
        %v440 = vunpack.c.h.b16 %v428
        %v441 = vpack.c.b16 %v433, %v433
        %v442 = vpack.c.b16 %v434, %v434
        %v443 = vpack.c.b16 %v435, %v435
        %v444 = vpack.c.b16 %v436, %v436
        %v445 = vpack.c.b16 %v437, %v437
        %v446 = vpack.c.b16 %v438, %v438
        %v447 = vpack.c.b16 %v439, %v439
        %v448 = vpack.c.b16 %v440, %v440
        %457 = vst [vmem:[%s217] sm:$0xf] %v441
        %458 = vst [vmem:[%s217 + $0x4] sm:$0xf] %v442
        %459 = vst [vmem:[%s217 + $0x8] sm:$0xf] %v443
        %460 = vst [vmem:[%s217 + $0xc] sm:$0xf] %v444
        %461 = vst [vmem:[%s217 + $0x10] sm:$0xf] %v445
        %462 = vst [vmem:[%s217 + $0x14] sm:$0xf] %v446
        %463 = vst [vmem:[%s217 + $0x18] sm:$0xf] %v447
        %464 = vst [vmem:[%s217 + $0x1c] sm:$0xf] %v448
      $region40: #{graph_cnn_forward.2} parent=31 // pred_fallthru
        _
      %s465 = smul.u32 8, %s18
      %p466 = scmp.lt.s32.totalorder %s465, 15
      %s467 = scalar_select %p466, %s465, 15
      %s468 = smul.addr %s467, 4
      %s469 = scalar_lea.vmem %s3, %s468
      // Predicated region
      $region41: #{graph_cnn_forward.2} parent=31 // pred_check
        %p470 = pneg %p119
      $region42: #{graph_cnn_forward.2} parent=31 // pred_check_branch
        %472 = sbr.rel (%p470) target = $region44
      $region43: #{graph_cnn_forward.2} parent=31 // pred_region
        %s473 = smul.u32 8, %s18
      $region44: #{graph_cnn_forward.2} parent=31 // pred_fallthru
        _
    $region32: #{graph_cnn_forward.2} parent=5 // pred_fallthru
      _
    %p474 = scmp.le.s32.totalorder 2, %s9
    // Predicated region
    $region45: #{graph_cnn_forward.2} parent=5 // pred_check
      %p475 = pneg %p474
    $region46: #{graph_cnn_forward.2} parent=5 // pred_check_branch
      %477 = sbr.rel (%p475) target = $region48
    $region47: #{graph_cnn_forward.2} parent=5 // pred_region
      %s478 = ssub.s32 %s9, 2
      // Predicated region
      $region49: #{graph_cnn_forward.2} parent=47 // pred_check
        %p479 = pneg %p125
      $region50: #{graph_cnn_forward.2} parent=47 // pred_check_branch
        %481 = sbr.rel (%p479) target = $region52
      $region51: #{graph_cnn_forward.2} parent=47 // pred_region
        %s482 = smul.u32 8, %s20
        %p483 = scmp.lt.s32.totalorder %s482, 15
        %s484 = scalar_select %p483, %s482, 15
        %s485 = smul.addr %s484, 4
        %s486 = scalar_lea.vmem %s3, %s485
      $region52: #{graph_cnn_forward.2} parent=47 // pred_fallthru
        _
    $region48: #{graph_cnn_forward.2} parent=5 // pred_fallthru
      _
  $region6: #{graph_cnn_forward.2} parent=0 // loop_footer
    %s13 = sadd.s32 1, %s9
  $region7: #{graph_cnn_forward.2} parent=0 // loop_footer_branch
    %8 = sbr.rel target = $region3
  $region8: #{graph_cnn_forward.2} parent=0 // loop_exit
    _

// kernel: graph_cnn_forward.3
$region0: #{graph_cnn_forward.3}
  #allocation0 [shape = 'u32[]', space=smem, size = 0x4, offset = 0x4, fixed_abs, tag = 'smem constant byte address 0x4 - core index']
  #allocation1 [shape = 'u32[144,128]{1,0:T(1,128)}', space=vmem, size = 0x12000, scoped, tag = 'internal scratch']
  #allocation2 [shape = 'f32[64,128]{1,0:T(8,128)}', space=vmem, size = 0x8000, scoped, tag = 'scratch operand']
  %s0 = inlined_call_operand.vmem [shape: s8[128,128], index: 0, kind: input, shape index: {}]
  %s1 = inlined_call_operand.vmem [shape: bf16[128,128], index: 1, kind: input, shape index: {}]
  %s2 = inlined_call_operand.vmem [shape: f32[1,128], index: 2, kind: input, shape index: {}]
  %s3 = inlined_call_operand.vmem [shape: f32[128,128], index: 3, kind: output, shape index: {}]
  %s4 = sld [smem:[#allocation0]]
  $region53: #{graph_cnn_forward.3} parent=0
    _
  %s6 = ssub.s32 1, %s4
  %s7 = scalar_select 0, %s6, %s4
  loop: start=0, step=1, limit=4
  $region2: #{graph_cnn_forward.3} parent=0 // loop_pre_header
    _
  $region3: #{graph_cnn_forward.3} parent=0 // loop_header
    %s9 = sphi 0, %s13
    %p10 = scmp.ge.s32.totalorder %s9, 4
    %s16 = sphi 0, %s28
    %s17 = sphi 0, %s24
    %s18 = sphi 0, %s16
    %s19 = sphi 0, %s17
    %s20 = sphi 0, %s18
    %s21 = sphi 0, %s19
    %s33 = sphi 0, %s35
    %s36 = sphi 0, %s33
    %s37 = sphi 0, %s36
    %s53 = sphi 0, %s37
    %s59 = sphi 0, %s61
    %s62 = sphi 0, %s59
    %s63 = sphi 0, %s62
    %s79 = sphi 0, %s63
    %s83 = sphi 0, %s83
    %s85 = sphi 0, %s83
    %s86 = sphi 0, %s85
    %s100 = sphi 0, %s86
    %s106 = sphi 0, %s108
    %s109 = sphi 0, %s106
    %s110 = sphi 0, %s109
    %s126 = sphi 0, %s110
  $region4: #{graph_cnn_forward.3} parent=0 // loop_header_branch
    %12 = sbr.rel (%p10) target = $region8
  $region5: #{graph_cnn_forward.3} parent=0 // loop_body
    %s14 = ssub.s32 %s9, 1
    %s15 = ssub.s32 %s9, 2
    %s22 = sadd.s32 1, %s17
    %p23 = scmp.ge.s32.totalorder %s22, 1
    %s24 = scalar_select %p23, 0, %s22
    %s25 = sadd.s32 1, %s16
    %s26 = scalar_select %p23, %s25, %s16
    %p27 = scmp.ge.s32.totalorder %s26, 2
    %s28 = scalar_select %p27, 0, %s26
    %s29 = ssub.s32 %s16, %s28
    %s30 = ssub.s32 %s17, %s24
    %s31 = sor.u32 %s29, %s30
    %p32 = scmp.eq.s32.totalorder %s31, 0
    %s34 = sadd.s32 %s33, 1
    %s35 = scalar_select %p32, %s33, %s34
    %p38 = pneg %p32
    %p39 = scmp.eq.s32.totalorder %s9, 1
    %p40 = por %p38, %p39
    %p41 = scmp.ne.s32.totalorder %s33, %s36
    %p42 = scmp.eq.s32.totalorder %s9, 0
    %p43 = por %p41, %p42
    %p44 = scmp.ne.s32.totalorder %s33, %s36
    %p45 = scmp.eq.s32.totalorder %s14, 1
    %p46 = por %p44, %p45
    %p47 = scmp.ne.s32.totalorder %s36, %s37
    %p48 = scmp.eq.s32.totalorder %s14, 0
    %p49 = por %p47, %p48
    %p50 = scmp.ne.s32.totalorder %s36, %s37
    %p51 = scmp.eq.s32.totalorder %s15, 1
    %p52 = por %p50, %p51
    %p54 = scmp.ne.s32.totalorder %s37, %s53
    %p55 = scmp.eq.s32.totalorder %s15, 0
    %p56 = por %p54, %p55
    %s57 = ssub.s32 %s17, %s24
    %p58 = scmp.eq.s32.totalorder %s57, 0
    %s60 = sadd.s32 %s59, 1
    %s61 = scalar_select %p58, %s59, %s60
    %p64 = pneg %p58
    %p65 = scmp.eq.s32.totalorder %s9, 1
    %p66 = por %p64, %p65
    %p67 = scmp.ne.s32.totalorder %s59, %s62
    %p68 = scmp.eq.s32.totalorder %s9, 0
    %p69 = por %p67, %p68
    %p70 = scmp.ne.s32.totalorder %s59, %s62
    %p71 = scmp.eq.s32.totalorder %s14, 1
    %p72 = por %p70, %p71
    %p73 = scmp.ne.s32.totalorder %s62, %s63
    %p74 = scmp.eq.s32.totalorder %s14, 0
    %p75 = por %p73, %p74
    %p76 = scmp.ne.s32.totalorder %s62, %s63
    %p77 = scmp.eq.s32.totalorder %s15, 1
    %p78 = por %p76, %p77
    %p80 = scmp.ne.s32.totalorder %s63, %s79
    %p81 = scmp.eq.s32.totalorder %s15, 0
    %p82 = por %p80, %p81
    %s84 = sadd.s32 %s83, 1
    %p87 = scmp.eq.s32.totalorder %s9, 1
    %p88 = scmp.ne.s32.totalorder %s83, %s85
    %p89 = scmp.eq.s32.totalorder %s9, 0
    %p90 = por %p88, %p89
    %p91 = scmp.ne.s32.totalorder %s83, %s85
    %p92 = scmp.eq.s32.totalorder %s14, 1
    %p93 = por %p91, %p92
    %p94 = scmp.ne.s32.totalorder %s85, %s86
    %p95 = scmp.eq.s32.totalorder %s14, 0
    %p96 = por %p94, %p95
    %p97 = scmp.ne.s32.totalorder %s85, %s86
    %p98 = scmp.eq.s32.totalorder %s15, 1
    %p99 = por %p97, %p98
    %p101 = scmp.ne.s32.totalorder %s86, %s100
    %p102 = scmp.eq.s32.totalorder %s15, 0
    %p103 = por %p101, %p102
    %s104 = ssub.s32 %s16, %s28
    %p105 = scmp.eq.s32.totalorder %s104, 0
    %s107 = sadd.s32 %s106, 1
    %s108 = scalar_select %p105, %s106, %s107
    %p111 = pneg %p105
    %p112 = scmp.eq.s32.totalorder %s9, 1
    %p113 = por %p111, %p112
    %p114 = scmp.ne.s32.totalorder %s106, %s109
    %p115 = scmp.eq.s32.totalorder %s9, 0
    %p116 = por %p114, %p115
    %p117 = scmp.ne.s32.totalorder %s106, %s109
    %p118 = scmp.eq.s32.totalorder %s14, 1
    %p119 = por %p117, %p118
    %p120 = scmp.ne.s32.totalorder %s109, %s110
    %p121 = scmp.eq.s32.totalorder %s14, 0
    %p122 = por %p120, %p121
    %p123 = scmp.ne.s32.totalorder %s109, %s110
    %p124 = scmp.eq.s32.totalorder %s15, 1
    %p125 = por %p123, %p124
    %p127 = scmp.ne.s32.totalorder %s110, %s126
    %p128 = scmp.eq.s32.totalorder %s15, 0
    %p129 = por %p127, %p128
    %p130 = scmp.le.s32.totalorder 1, %s9
    %p131 = scmp.lt.s32.totalorder %s9, 3
    %p132 = pnand %p130, %p131
    %p133 = pneg %p132
    // Predicated region
    $region9: #{graph_cnn_forward.3} parent=5 // pred_check
      _
    $region10: #{graph_cnn_forward.3} parent=5 // pred_check_branch
      %135 = sbr.rel (%p132) target = $region12
    $region11: #{graph_cnn_forward.3} parent=5 // pred_region
      %s136 = ssub.s32 %s9, 1
      // Predicated region
      $region13: #{graph_cnn_forward.3} parent=11 // pred_check
        %p137 = pneg %p75
      $region14: #{graph_cnn_forward.3} parent=11 // pred_check_branch
        %139 = sbr.rel (%p137) target = $region16
      $region15: #{graph_cnn_forward.3} parent=11 // pred_region
        %s140 = smul.u32 16, %s19
        %p141 = scmp.lt.s32.totalorder %s140, 15
        %s142 = scalar_select %p141, %s140, 15
        %s143 = smul.addr %s142, 4
        %s144 = scalar_lea.vmem %s1, %s143
        %s145 = smul.u32 16, %s19
      $region16: #{graph_cnn_forward.3} parent=11 // pred_fallthru
        _
      // Predicated region
      $region17: #{graph_cnn_forward.3} parent=11 // pred_check
        %p146 = pneg %p96
      $region18: #{graph_cnn_forward.3} parent=11 // pred_check_branch
        %148 = sbr.rel (%p146) target = $region20
      $region19: #{graph_cnn_forward.3} parent=11 // pred_region
        _
      $region20: #{graph_cnn_forward.3} parent=11 // pred_fallthru
        _
    $region12: #{graph_cnn_forward.3} parent=5 // pred_fallthru
      _
    %p149 = scmp.lt.s32.totalorder %s9, 2
    // Predicated region
    $region21: #{graph_cnn_forward.3} parent=5 // pred_check
      %p150 = pneg %p149
    $region22: #{graph_cnn_forward.3} parent=5 // pred_check_branch
      %152 = sbr.rel (%p150) target = $region24
    $region23: #{graph_cnn_forward.3} parent=5 // pred_region
      // Predicated region
      $region25: #{graph_cnn_forward.3} parent=23 // pred_check
        %p153 = pneg %p43
      $region26: #{graph_cnn_forward.3} parent=23 // pred_check_branch
        %155 = sbr.rel (%p153) target = $region28
      $region27: #{graph_cnn_forward.3} parent=23 // pred_region
        %s156 = smul.u32 2, %s16
        %p157 = scmp.lt.s32.totalorder %s156, 3
        %s158 = scalar_select %p157, %s156, 3
        %p159 = scmp.lt.s32.totalorder %s17, 0
        %s160 = scalar_select %p159, %s17, 0
        %s161 = sadd.s32 %s160, %s158
        %s162 = smul.addr %s161, 8
        %s163 = scalar_lea.vmem %s0, %s162
        %s164 = smul.u32 2, %s16
      $region28: #{graph_cnn_forward.3} parent=23 // pred_fallthru
        _
    $region24: #{graph_cnn_forward.3} parent=5 // pred_fallthru
      _
    %p165 = scmp.le.s32.totalorder 1, %s9
    %p166 = scmp.lt.s32.totalorder %s9, 3
    %p167 = pnand %p165, %p166
    %p168 = pneg %p167
    // Predicated region
    $region29: #{graph_cnn_forward.3} parent=5 // pred_check
      _
    $region30: #{graph_cnn_forward.3} parent=5 // pred_check_branch
      %170 = sbr.rel (%p167) target = $region32
    $region31: #{graph_cnn_forward.3} parent=5 // pred_region
      %s171 = ssub.s32 %s9, 1
      %s172 = smul.u32 2, %s18
      %p173 = scmp.lt.s32.totalorder %s172, 3
      %s174 = scalar_select %p173, %s172, 3
      %p175 = scmp.lt.s32.totalorder %s19, 0
      %s176 = scalar_select %p175, %s19, 0
      %s177 = sadd.s32 %s176, %s174
      %s178 = smul.addr %s177, 8
      %s179 = scalar_lea.vmem %s0, %s178
      %p180 = pneg %p49
      %p181 = pneg %p46
      %s182 = smul.u32 16, %s19
      %p183 = scmp.lt.s32.totalorder %s182, 15
      %s184 = scalar_select %p183, %s182, 15
      %s185 = smul.addr %s184, 4
      %s186 = scalar_lea.vmem %s1, %s185
      %p187 = pneg %p75
      %p188 = pneg %p72
      %p189 = pneg %p96
      %p190 = pneg %p93
      %p191 = pneg %p122
      %p192 = pneg %p119
      %s193 = smul.u32 8, %s18
      %p194 = scmp.lt.s32.totalorder %s193, 15
      %s195 = scalar_select %p194, %s193, 15
      %s196 = smul.addr %s195, 8
      %s197 = scalar_lea.vmem %s3, %s196
      %s198 = smul.u32 2, %s18
      %p199 = scmp.lt.s32.totalorder %s198, 3
      %s200 = scalar_select %p199, %s198, 3
      %p201 = scmp.lt.s32.totalorder %s19, 0
      %s202 = scalar_select %p201, %s19, 0
      %s203 = sadd.s32 %s202, %s200
      %s204 = smul.addr %s203, 8
      %s205 = scalar_lea.vmem %s0, %s204
      %s206 = smul.u32 2, %s18
      %s207 = smul.u32 16, %s19
      %p208 = scmp.lt.s32.totalorder %s207, 15
      %s209 = scalar_select %p208, %s207, 15
      %s210 = smul.addr %s209, 4
      %s211 = scalar_lea.vmem %s1, %s210
      %s212 = smul.u32 16, %s19
      %s213 = smul.u32 8, %s18
      %p214 = scmp.lt.s32.totalorder %s213, 15
      %s215 = scalar_select %p214, %s213, 15
      %s216 = smul.addr %s215, 8
      %s217 = scalar_lea.vmem %s3, %s216
      %s218 = smul.u32 8, %s18
      %p220 = scmp.eq.s32.totalorder %s19, 0
      // Predicated region
      $region33: #{graph_cnn_forward.3} parent=31 // pred_check
        %p221 = pneg %p220
      $region34: #{graph_cnn_forward.3} parent=31 // pred_check_branch
        %223 = sbr.rel (%p221) target = $region36
      $region35: #{graph_cnn_forward.3} parent=31 // pred_region
        %224 = vst [vmem:[#allocation2] sm:$0xff] 0.0
        %225 = vst [vmem:[#allocation2 + $0x8] sm:$0xff] 0.0
        %226 = vst [vmem:[#allocation2 + $0x10] sm:$0xff] 0.0
        %227 = vst [vmem:[#allocation2 + $0x18] sm:$0xff] 0.0
        %228 = vst [vmem:[#allocation2 + $0x20] sm:$0xff] 0.0
        %229 = vst [vmem:[#allocation2 + $0x28] sm:$0xff] 0.0
        %230 = vst [vmem:[#allocation2 + $0x30] sm:$0xff] 0.0
        %231 = vst [vmem:[#allocation2 + $0x38] sm:$0xff] 0.0
      $region36: #{graph_cnn_forward.3} parent=31 // pred_fallthru
        _
      %v232 = vld [vmem:[%s205] sm:$0xff]
      %v233 = vld [vmem:[%s205 + $0x8] sm:$0xff]
      %v234 = vunpack.c.l.s8.bf16 %v232
      %v235 = vunpack.c.h.s8.bf16 %v232
      %v236 = vunpack.c.l.s8.bf16 %v233
      %v237 = vunpack.c.h.s8.bf16 %v233
      %v238 = vld [vmem:[#allocation2] sm:$0xff]
      %v239 = vld [vmem:[#allocation2 + $0x8] sm:$0xff]
      %v240 = vld [vmem:[#allocation2 + $0x10] sm:$0xff]
      %v241 = vld [vmem:[#allocation2 + $0x18] sm:$0xff]
      %v242 = vld [vmem:[#allocation2 + $0x20] sm:$0xff]
      %v243 = vld [vmem:[#allocation2 + $0x28] sm:$0xff]
      %v244 = vld [vmem:[#allocation2 + $0x30] sm:$0xff]
      %v245 = vld [vmem:[#allocation2 + $0x38] sm:$0xff]
      %v246 = vld [vmem:[%s211] sm:$0xf]
      %v247 = vld [vmem:[%s211 + $0x4] sm:$0xf]
      %v248 = vld [vmem:[%s211 + $0x8] sm:$0xf]
      %v249 = vld [vmem:[%s211 + $0xc] sm:$0xf]
      %v250 = vld [vmem:[%s211 + $0x10] sm:$0xf]
      %v251 = vld [vmem:[%s211 + $0x14] sm:$0xf]
      %v252 = vld [vmem:[%s211 + $0x18] sm:$0xf]
      %v253 = vld [vmem:[%s211 + $0x1c] sm:$0xf]
      %v254 = vld [vmem:[%s211 + $0x20] sm:$0xf]
      %v255 = vld [vmem:[%s211 + $0x24] sm:$0xf]
      %v256 = vld [vmem:[%s211 + $0x28] sm:$0xf]
      %v257 = vld [vmem:[%s211 + $0x2c] sm:$0xf]
      %v258 = vld [vmem:[%s211 + $0x30] sm:$0xf]
      %v259 = vld [vmem:[%s211 + $0x34] sm:$0xf]
      %v260 = vld [vmem:[%s211 + $0x38] sm:$0xf]
      %v261 = vld [vmem:[%s211 + $0x3c] sm:$0xf]
      %v278 = vunpack.c.l.b16 %v246
      %v279 = vunpack.c.l.b16 %v247
      %v280 = vunpack.c.l.b16 %v248
      %v281 = vunpack.c.l.b16 %v249
      %v282 = vunpack.c.l.b16 %v250
      %v283 = vunpack.c.l.b16 %v251
      %v284 = vunpack.c.l.b16 %v252
      %v285 = vunpack.c.l.b16 %v253
      %v286 = vunpack.c.l.b16 %v254
      %v287 = vunpack.c.l.b16 %v255
      %v288 = vunpack.c.l.b16 %v256
      %v289 = vunpack.c.l.b16 %v257
      %v290 = vunpack.c.l.b16 %v258
      %v291 = vunpack.c.l.b16 %v259
      %v292 = vunpack.c.l.b16 %v260
      %v293 = vunpack.c.l.b16 %v261
      %v294 = vpack.c.b16 %v279, %v278
      %v295 = vpack.c.b16 %v281, %v280
      %v296 = vpack.c.b16 %v283, %v282
      %v297 = vpack.c.b16 %v285, %v284
      %v298 = vpack.c.b16 %v287, %v286
      %v299 = vpack.c.b16 %v289, %v288
      %v300 = vpack.c.b16 %v291, %v290
      %v301 = vpack.c.b16 %v293, %v292
      %310 = vmatprep.subr.bf16.mxu0 0
      %311 = vmatpush1.bf16.msra.mxu0 %v301
      %312 = vmatprep.subr.bf16.mxu0 0
      %313 = vmatpush1.bf16.msra.mxu0 %v300
      %314 = vmatprep.subr.bf16.mxu0 0
      %315 = vmatpush1.bf16.msra.mxu0 %v299
      %316 = vmatprep.subr.bf16.mxu0 0
      %317 = vmatpush1.bf16.msra.mxu0 %v298
      %318 = vmatprep.subr.bf16.mxu0 0
      %319 = vmatpush1.bf16.msra.mxu0 %v297
      %320 = vmatprep.subr.bf16.mxu0 0
      %321 = vmatpush1.bf16.msra.mxu0 %v296
      %322 = vmatprep.subr.bf16.mxu0 0
      %323 = vmatpush1.bf16.msra.mxu0 %v295
      %324 = vmatprep.subr.bf16.mxu0 0
      %325 = vmatpush1.bf16.msra.mxu0 %v294
      %326 = vmatprep.subr.bf16.mxu0 0
      %327 = vmatpush2.bf16.msra.mxu0 0
      %328 = vmatprep.subr.bf16.mxu0 0
      %329 = vmatpush2.bf16.msra.mxu0 0
      %330 = vmatprep.subr.bf16.mxu0 0
      %331 = vmatpush2.bf16.msra.mxu0 0
      %332 = vmatprep.subr.bf16.mxu0 0
      %333 = vmatpush2.bf16.msra.mxu0 0
      %334 = vmatprep.subr.bf16.mxu0 0
      %335 = vmatpush2.bf16.msra.mxu0 0
      %336 = vmatprep.subr.bf16.mxu0 0
      %337 = vmatpush2.bf16.msra.mxu0 0
      %338 = vmatprep.subr.bf16.mxu0 0
      %339 = vmatpush2.bf16.msra.mxu0 0
      %340 = vmatprep.subr.bf16.mxu0 0
      %341 = vmatpush2.bf16.msra.mxu0 0
      %342 = vmatprep.mubr.bf16.mxu0 0
      %343 = vmatmul.mubr.bf16.gmra.mxu0 %v234
      %v344 = vpop.f32.mrf.mxu0
      %v345 = vadd.f32 0.0, %v344
      %v346 = vpop.f32.mrf.mxu0
      %v347 = vpop.f32.mrf.mxu0
      %v348 = vadd.f32 0.0, %v347
      %v349 = vpop.f32.mrf.mxu0
      %350 = vmatprep.mubr.bf16.mxu0 0
      %351 = vmatmul.mubr.bf16.gmra.mxu0 %v235
      %v352 = vpop.f32.mrf.mxu0
      %v353 = vadd.f32 0.0, %v352
      %v354 = vpop.f32.mrf.mxu0
      %v355 = vpop.f32.mrf.mxu0
      %v356 = vadd.f32 0.0, %v355
      %v357 = vpop.f32.mrf.mxu0
      %358 = vmatprep.mubr.bf16.mxu0 0
      %359 = vmatmul.mubr.bf16.gmra.mxu0 %v236
      %v360 = vpop.f32.mrf.mxu0
      %v361 = vadd.f32 0.0, %v360
      %v362 = vpop.f32.mrf.mxu0
      %v363 = vpop.f32.mrf.mxu0
      %v364 = vadd.f32 0.0, %v363
      %v365 = vpop.f32.mrf.mxu0
      %366 = vmatprep.mubr.bf16.mxu0 0
      %367 = vmatmul.mubr.bf16.gmra.mxu0 %v237
      %v368 = vpop.f32.mrf.mxu0
      %v369 = vadd.f32 0.0, %v368
      %v370 = vpop.f32.mrf.mxu0
      %v371 = vpop.f32.mrf.mxu0
      %v372 = vadd.f32 0.0, %v371
      %v373 = vpop.f32.mrf.mxu0
      %374 = vdwg.mxu0
      %v375 = vadd.f32 %v238, %v345
      %v376 = vadd.f32 %v239, %v348
      %v377 = vadd.f32 %v240, %v353
      %v378 = vadd.f32 %v241, %v356
      %v379 = vadd.f32 %v242, %v361
      %v380 = vadd.f32 %v243, %v364
      %v381 = vadd.f32 %v244, %v369
      %v382 = vadd.f32 %v245, %v372
      %383 = vst [vmem:[#allocation2] sm:$0xff] %v375
      %384 = vst [vmem:[#allocation2 + $0x8] sm:$0xff] %v376
      %385 = vst [vmem:[#allocation2 + $0x10] sm:$0xff] %v377
      %386 = vst [vmem:[#allocation2 + $0x18] sm:$0xff] %v378
      %387 = vst [vmem:[#allocation2 + $0x20] sm:$0xff] %v379
      %388 = vst [vmem:[#allocation2 + $0x28] sm:$0xff] %v380
      %389 = vst [vmem:[#allocation2 + $0x30] sm:$0xff] %v381
      %390 = vst [vmem:[#allocation2 + $0x38] sm:$0xff] %v382
      // Predicated region
      $region37: #{graph_cnn_forward.3} parent=31 // pred_check
        %p391 = pneg %p220
      $region38: #{graph_cnn_forward.3} parent=31 // pred_check_branch
        %393 = sbr.rel (%p391) target = $region40
      $region39: #{graph_cnn_forward.3} parent=31 // pred_region
        %v394 = vld [vmem:[#allocation2] sm:$0xff]
        %v395 = vld [vmem:[#allocation2 + $0x8] sm:$0xff]
        %v396 = vld [vmem:[#allocation2 + $0x10] sm:$0xff]
        %v397 = vld [vmem:[#allocation2 + $0x18] sm:$0xff]
        %v398 = vld [vmem:[#allocation2 + $0x20] sm:$0xff]
        %v399 = vld [vmem:[#allocation2 + $0x28] sm:$0xff]
        %v400 = vld [vmem:[#allocation2 + $0x30] sm:$0xff]
        %v401 = vld [vmem:[#allocation2 + $0x38] sm:$0xff]
        %v402 = vld [vmem:[%s2] sm:$0x1]
        %v404 = vlaneseq
        %v405 = vshrl.u32 %v404, 7
        %v406 = vsub.s32 0, %v405
        %v407 = vrot.slane %v402, %v406
        %v409 = vadd.f32 %v394, %v407
        %v410 = vadd.f32 %v395, %v407
        %v411 = vadd.f32 %v396, %v407
        %v412 = vadd.f32 %v397, %v407
        %v413 = vadd.f32 %v398, %v407
        %v414 = vadd.f32 %v399, %v407
        %v415 = vadd.f32 %v400, %v407
        %v416 = vadd.f32 %v401, %v407
        %v417 = vlaneseq
        %v418 = vand.u32 %v417, 127
        %vm419 = vcmp.lt.s32.totalorder %v418, 8
        %v420 = vsel %vm419, %v409, -inf
        %v421 = vsel %vm419, %v410, -inf
        %v422 = vsel %vm419, %v411, -inf
        %v423 = vsel %vm419, %v412, -inf
        %v424 = vsel %vm419, %v413, -inf
        %v425 = vsel %vm419, %v414, -inf
        %v426 = vsel %vm419, %v415, -inf
        %v427 = vsel %vm419, %v416, -inf
        %428 = vmax.xlane.f32.xlu0 %v420
        %v429 = vpop.xlane.xlu0 %428
        %430 = vmax.xlane.f32.xlu0 %v421
        %v431 = vpop.xlane.xlu0 %430
        %432 = vmax.xlane.f32.xlu0 %v422
        %v433 = vpop.xlane.xlu0 %432
        %434 = vmax.xlane.f32.xlu0 %v423
        %v435 = vpop.xlane.xlu0 %434
        %436 = vmax.xlane.f32.xlu0 %v424
        %v437 = vpop.xlane.xlu0 %436
        %438 = vmax.xlane.f32.xlu0 %v425
        %v439 = vpop.xlane.xlu0 %438
        %440 = vmax.xlane.f32.xlu0 %v426
        %v441 = vpop.xlane.xlu0 %440
        %442 = vmax.xlane.f32.xlu0 %v427
        %v443 = vpop.xlane.xlu0 %442
        %v444 = vsub.f32 %v420, %v429
        %v445 = vsub.f32 %v421, %v431
        %v446 = vsub.f32 %v422, %v433
        %v447 = vsub.f32 %v423, %v435
        %v448 = vsub.f32 %v424, %v437
        %v449 = vsub.f32 %v425, %v439
        %v450 = vsub.f32 %v426, %v441
        %v451 = vsub.f32 %v427, %v443
        %v452 = vmul.f32 %v444, 1.442695
        %v453 = vpow.pop %v452
        %v454 = vmul.f32 %v445, 1.442695
        %v455 = vpow.pop %v454
        %v456 = vmul.f32 %v446, 1.442695
        %v457 = vpow.pop %v456
        %v458 = vmul.f32 %v447, 1.442695
        %v459 = vpow.pop %v458
        %v460 = vmul.f32 %v448, 1.442695
        %v461 = vpow.pop %v460
        %v462 = vmul.f32 %v449, 1.442695
        %v463 = vpow.pop %v462
        %v464 = vmul.f32 %v450, 1.442695
        %v465 = vpow.pop %v464
        %v466 = vmul.f32 %v451, 1.442695
        %v467 = vpow.pop %v466
        %468 = vadd.xlane.f32.xlu0 %v453
        %v469 = vpop.xlane.xlu0 %468
        %470 = vadd.xlane.f32.xlu0 %v455
        %v471 = vpop.xlane.xlu0 %470
        %472 = vadd.xlane.f32.xlu0 %v457
        %v473 = vpop.xlane.xlu0 %472
        %474 = vadd.xlane.f32.xlu0 %v459
        %v475 = vpop.xlane.xlu0 %474
        %476 = vadd.xlane.f32.xlu0 %v461
        %v477 = vpop.xlane.xlu0 %476
        %478 = vadd.xlane.f32.xlu0 %v463
        %v479 = vpop.xlane.xlu0 %478
        %480 = vadd.xlane.f32.xlu0 %v465
        %v481 = vpop.xlane.xlu0 %480
        %482 = vadd.xlane.f32.xlu0 %v467
        %v483 = vpop.xlane.xlu0 %482
        %v484 = vlog2.pop %v469
        %v485 = vmul.f32 %v484, 0.6931472
        %v486 = vlog2.pop %v471
        %v487 = vmul.f32 %v486, 0.6931472
        %v488 = vlog2.pop %v473
        %v489 = vmul.f32 %v488, 0.6931472
        %v490 = vlog2.pop %v475
        %v491 = vmul.f32 %v490, 0.6931472
        %v492 = vlog2.pop %v477
        %v493 = vmul.f32 %v492, 0.6931472
        %v494 = vlog2.pop %v479
        %v495 = vmul.f32 %v494, 0.6931472
        %v496 = vlog2.pop %v481
        %v497 = vmul.f32 %v496, 0.6931472
        %v498 = vlog2.pop %v483
        %v499 = vmul.f32 %v498, 0.6931472
        %v500 = vsub.f32 %v444, %v485
        %v501 = vsub.f32 %v445, %v487
        %v502 = vsub.f32 %v446, %v489
        %v503 = vsub.f32 %v447, %v491
        %v504 = vsub.f32 %v448, %v493
        %v505 = vsub.f32 %v449, %v495
        %v506 = vsub.f32 %v450, %v497
        %v507 = vsub.f32 %v451, %v499
        %v508 = vsel %vm419, %v500, 0.0
        %v509 = vsel %vm419, %v501, 0.0
        %v510 = vsel %vm419, %v502, 0.0
        %v511 = vsel %vm419, %v503, 0.0
        %v512 = vsel %vm419, %v504, 0.0
        %v513 = vsel %vm419, %v505, 0.0
        %v514 = vsel %vm419, %v506, 0.0
        %v515 = vsel %vm419, %v507, 0.0
        %516 = vst [vmem:[%s217] sm:$0xff] %v508
        %517 = vst [vmem:[%s217 + $0x8] sm:$0xff] %v509
        %518 = vst [vmem:[%s217 + $0x10] sm:$0xff] %v510
        %519 = vst [vmem:[%s217 + $0x18] sm:$0xff] %v511
        %520 = vst [vmem:[%s217 + $0x20] sm:$0xff] %v512
        %521 = vst [vmem:[%s217 + $0x28] sm:$0xff] %v513
        %522 = vst [vmem:[%s217 + $0x30] sm:$0xff] %v514
        %523 = vst [vmem:[%s217 + $0x38] sm:$0xff] %v515
      $region40: #{graph_cnn_forward.3} parent=31 // pred_fallthru
        _
      %s524 = smul.u32 8, %s18
      %p525 = scmp.lt.s32.totalorder %s524, 15
      %s526 = scalar_select %p525, %s524, 15
      %s527 = smul.addr %s526, 8
      %s528 = scalar_lea.vmem %s3, %s527
      // Predicated region
      $region41: #{graph_cnn_forward.3} parent=31 // pred_check
        %p529 = pneg %p119
      $region42: #{graph_cnn_forward.3} parent=31 // pred_check_branch
        %531 = sbr.rel (%p529) target = $region44
      $region43: #{graph_cnn_forward.3} parent=31 // pred_region
        %s532 = smul.u32 8, %s18
      $region44: #{graph_cnn_forward.3} parent=31 // pred_fallthru
        _
    $region32: #{graph_cnn_forward.3} parent=5 // pred_fallthru
      _
    %p533 = scmp.le.s32.totalorder 2, %s9
    // Predicated region
    $region45: #{graph_cnn_forward.3} parent=5 // pred_check
      %p534 = pneg %p533
    $region46: #{graph_cnn_forward.3} parent=5 // pred_check_branch
      %536 = sbr.rel (%p534) target = $region48
    $region47: #{graph_cnn_forward.3} parent=5 // pred_region
      %s537 = ssub.s32 %s9, 2
      // Predicated region
      $region49: #{graph_cnn_forward.3} parent=47 // pred_check
        %p538 = pneg %p125
      $region50: #{graph_cnn_forward.3} parent=47 // pred_check_branch
        %540 = sbr.rel (%p538) target = $region52
      $region51: #{graph_cnn_forward.3} parent=47 // pred_region
        %s541 = smul.u32 8, %s20
        %p542 = scmp.lt.s32.totalorder %s541, 15
        %s543 = scalar_select %p542, %s541, 15
        %s544 = smul.addr %s543, 8
        %s545 = scalar_lea.vmem %s3, %s544
      $region52: #{graph_cnn_forward.3} parent=47 // pred_fallthru
        _
    $region48: #{graph_cnn_forward.3} parent=5 // pred_fallthru
      _
  $region6: #{graph_cnn_forward.3} parent=0 // loop_footer
    %s13 = sadd.s32 1, %s9
  $region7: #{graph_cnn_forward.3} parent=0 // loop_footer_branch
    %8 = sbr.rel target = $region3
  $region8: #{graph_cnn_forward.3} parent=0 // loop_exit
    _

</llo_original>
